<compile_context>
chip_gen: v5e
topology: v5e:2x2
jax: 0.10.0
libtpu: 0.0.40
codegen_flags: <defaults>
</compile_context>

<pallas_src>
from typing import List

import numpy as np
import jax
import jax.numpy as jnp
from jax.experimental import pallas as pl
from jax.experimental.pallas import tpu as pltpu


def _round_up(x: int, m: int) -> int:
    return ((x + m - 1) // m) * m


def _vmem_limit_bytes() -> int:
    """Scoped VMEM budget: half of physical, clamped to [32, 64] MiB."""
    try:
        phys = int(pltpu.get_tpu_info().vmem_capacity_bytes)
    except Exception:
        phys = 64 * 1024 * 1024          # conservative fallback = v7x per-TC VMEM
    return max(32 * 1024 * 1024, min(phys // 2, 64 * 1024 * 1024))


def _onehot_bf16(seg, shape, iota_dim):
    """Membership one-hot built in-register: rows/cols of graph `seg` along iota_dim."""
    ids = jax.lax.broadcasted_iota(jnp.int32, shape, iota_dim)
    return jnp.where(ids == seg, 1.0, 0.0).astype(jnp.bfloat16)


def _split_dot(onehot_bf16, dense_f32):
    """one_hot @ dense with the f32 operand split into 3 bf16 terms.

    The one-hot operand is exactly representable in bf16, so 3 MXU passes
    reproduce the f32 product to ~2^-27 relative (vs. 6 passes for
    Precision.HIGHEST and a lossy single pass for DEFAULT)."""
    parts = []
    rem = dense_f32
    for _ in range(3):
        p = rem.astype(jnp.bfloat16)
        parts.append(p)
        rem = rem - p.astype(jnp.float32)
    out = jnp.dot(onehot_bf16, parts[0], preferred_element_type=jnp.float32)
    for p in parts[1:]:
        out = out + jnp.dot(onehot_bf16, p, preferred_element_type=jnp.float32)
    return out


# --------------------------------------------------------------------------- #
# Fused single-step kernel (whole problem resident in VMEM).
# Exact two-pass per-graph variance: no cancellation, 1 read + 1 write of x.
# --------------------------------------------------------------------------- #
def _make_fused_kernel(eps: float):
    def kernel(segrow_ref, segcol_ref, invn_ref, invnm1_ref,
               gam_ref, bet_ref, x_ref, o_ref):
        x = x_ref[...]                                   # (rows, F) f32
        rows = x.shape[0]
        gp = invn_ref.shape[0]
        oh_gr = _onehot_bf16(segrow_ref[...], (gp, rows), 0)   # (gp, rows)
        oh_rg = _onehot_bf16(segcol_ref[...], (rows, gp), 1)   # (rows, gp)
        mean = _split_dot(oh_gr, x) * invn_ref[...]            # (gp, F)
        xc = x - _split_dot(oh_rg, mean)                       # centered rows
        var = _split_dot(oh_gr, xc * xc) * invnm1_ref[...]     # unbiased (ddof=1)
        scale = gam_ref[...] / (jnp.sqrt(var) + eps)           # (gp, F)
        # y = gamma*(x-mean)/(std+eps) + beta ; beta added exactly (no broadcast dot)
        o_ref[...] = xc * _split_dot(oh_rg, scale) + bet_ref[...]
    return kernel


# --------------------------------------------------------------------------- #
# Streaming path: pass 1 = shifted one-pass segment stats, pass 2 = fused affine.
# --------------------------------------------------------------------------- #
def _stats_kernel(x_ref, seg_ref, shift_ref, acc_ref):
    """Accumulate per-graph sum / sum-of-squares of (x - shift) for one row tile."""
    @pl.when(pl.program_id(1) == 0)
    def _init():
        acc_ref[...] = jnp.zeros_like(acc_ref)

    xs = x_ref[...] - shift_ref[...]                     # (tr, F): conditions the variance
    gp = acc_ref.shape[0]
    tr = xs.shape[0]
    onehot = _onehot_bf16(seg_ref[...], (gp, tr), 0)     # (gp, tr), pad rows (-1) -> all zero
    xcat = jnp.concatenate([xs, xs * xs], axis=1)        # single fused dot for sum & sumsq
    acc_ref[...] = acc_ref[...] + _split_dot(onehot, xcat)


def _apply_kernel(seg_ref, scale_ref, shift_ref, x_ref, o_ref):
    """y = x * scale[graph(row)] + shift[graph(row)] for one row tile (fused affine)."""
    gp = scale_ref.shape[0]
    tr = x_ref.shape[0]
    onehot = _onehot_bf16(seg_ref[...], (tr, gp), 1)     # (tr, gp)
    sc = _split_dot(onehot, scale_ref[...])              # (tr, F) near-exact row broadcast
    sh = _split_dot(onehot, shift_ref[...])
    o_ref[...] = x_ref[...] * sc + sh                    # 2 VPU passes, lane-dense store


def graph_norm(x: jnp.ndarray, size: List[int], gamma: jnp.ndarray,
               beta: jnp.ndarray, eps: float = 1e-5) -> jnp.ndarray:
    """x: [N, F] float32; size: static per-graph node counts (contiguous segments)."""
    N, F = x.shape
    G = len(size)
    assert sum(size) == N and G >= 1 and all(s >= 1 for s in size)

    x = x.astype(jnp.float32)
    gamma2 = jnp.asarray(gamma, jnp.float32).reshape(1, F)
    beta2 = jnp.asarray(beta, jnp.float32).reshape(1, F)
    gp = _round_up(G, 8)
    vmem_limit = _vmem_limit_bytes()

    # ---- per-graph count metadata (numpy, O(G)); pad graphs get benign values ----
    inv_n_np = np.full((gp, 1), 0.5, np.float32)
    inv_nm1_np = np.ones((gp, 1), np.float32)
    for g, s in enumerate(size):
        inv_n_np[g, 0] = 1.0 / float(s)
        # NaN for single-node graphs: matches torch.std(ddof=1) behavior.
        inv_nm1_np[g, 0] = 1.0 / float(s - 1) if s > 1 else np.nan
    inv_n = jnp.asarray(inv_n_np)
    inv_nm1 = jnp.asarray(inv_nm1_np)
    # TODO(synk): a single-node graph yields NaN std (as in torch); through the
    # one-hot broadcast matmul that NaN would leak to other graphs in the batch.
    # If such graphs are expected, sanitize scale/shift and re-inject NaN per graph.

    def _seg_ids(n_rows: int) -> np.ndarray:
        seg = np.full((n_rows,), -1, np.int32)           # pad rows match no graph
        off = 0
        for g, s in enumerate(size):
            seg[off:off + s] = g
            off += s
        return seg

    # ------------------------------------------------------------------ #
    # Fused single-step path: x, its centered copy, the one-hots and y all
    # fit comfortably in VMEM -> 1 read + 1 write of x, exact 2-pass variance.
    # ------------------------------------------------------------------ #
    n_pad1 = _round_up(N, 8)
    fused_bytes = 4 * n_pad1 * F * 4 + 2 * n_pad1 * gp * 2 + 6 * gp * F * 4
    if fused_bytes <= vmem_limit // 3:
        seg = _seg_ids(n_pad1)
        x_p = x if n_pad1 == N else jnp.pad(x, ((0, n_pad1 - N), (0, 0)))
        y_p = pl.pallas_call(
            _make_fused_kernel(eps),
            out_shape=jax.ShapeDtypeStruct((n_pad1, F), jnp.float32),
            grid_spec=pltpu.PrefetchScalarGridSpec(
                num_scalar_prefetch=0,
                grid=(1,),
                in_specs=[
                    pl.BlockSpec((1, n_pad1), lambda i: (0, 0)),   # seg (row layout)
                    pl.BlockSpec((n_pad1, 1), lambda i: (0, 0)),   # seg (col layout)
                    pl.BlockSpec((gp, 1), lambda i: (0, 0)),       # 1/n
                    pl.BlockSpec((gp, 1), lambda i: (0, 0)),       # 1/(n-1)
                    pl.BlockSpec((1, F), lambda i: (0, 0)),        # gamma
                    pl.BlockSpec((1, F), lambda i: (0, 0)),        # beta
                    pl.BlockSpec((n_pad1, F), lambda i: (0, 0)),   # x
                ],
                out_specs=pl.BlockSpec((n_pad1, F), lambda i: (0, 0)),
            ),
            compiler_params=pltpu.CompilerParams(
                dimension_semantics=("arbitrary",),
                vmem_limit_bytes=vmem_limit),
        )(jnp.asarray(seg.reshape(1, -1)), jnp.asarray(seg.reshape(-1, 1)),
          inv_n, inv_nm1, gamma2, beta2, x_p)
        return y_p if n_pad1 == N else y_p[:N]

    # ------------------------------------------------------------------ #
    # Streaming path (large N): row-tiled stats + finalize + fused apply.
    # ------------------------------------------------------------------ #
    tile_budget = max(vmem_limit // 16, 1 << 20)             # ~4 MiB v5e/v6e, ~2 MiB v7x
    budget_rows = max(128, (tile_budget // (4 * F)) // 128 * 128)
    natural_rows = max(128, _round_up(pl.cdiv(N, 8), 128))   # aim for >= ~8 grid steps
    tr = min(budget_rows, natural_rows, 8192)
    ncs = 2 if pl.cdiv(N, tr) >= 2 else 1                    # 2-way split of the reduction (v7x TCs)
    n_pad = _round_up(N, ncs * tr)
    R = n_pad // (ncs * tr)                                  # row tiles per core

    seg = _seg_ids(n_pad)
    seg_row = jnp.asarray(seg.reshape(1, -1))                # (1, n_pad)  for the stats pass
    seg_col = jnp.asarray(seg.reshape(-1, 1))                # (n_pad, 1)  for the apply pass
    x_p = x if n_pad == N else jnp.pad(x, ((0, n_pad - N), (0, 0)))

    # Per-feature shift (sample-prefix mean) conditions the one-pass variance
    # against cancellation when the data has a large common offset.
    shiftc = jnp.mean(x[: min(N, 4096)], axis=0, keepdims=True)   # (1, F)

    # ---- pass 1: per-graph sum and sum-of-squares of (x - shift), split over 2 cores ----
    parts = pl.pallas_call(
        _stats_kernel,
        out_shape=jax.ShapeDtypeStruct((ncs * gp, 2 * F), jnp.float32),
        grid_spec=pltpu.PrefetchScalarGridSpec(
            num_scalar_prefetch=0,
            grid=(ncs, R),
            in_specs=[
                pl.BlockSpec((tr, F), lambda c, r: (c * R + r, 0)),   # x tile
                pl.BlockSpec((1, tr), lambda c, r: (0, c * R + r)),   # seg ids (int32)
                pl.BlockSpec((1, F), lambda c, r: (0, 0)),            # shift (resident)
            ],
            out_specs=pl.BlockSpec((gp, 2 * F), lambda c, r: (c, 0)), # per-core accumulator
        ),
        compiler_params=pltpu.CompilerParams(
            dimension_semantics=("parallel", "arbitrary"),
            vmem_limit_bytes=vmem_limit),
    )(x_p, seg_row, shiftc)

    # ---- tiny [Gp, F] finalize (XLA; negligible vs O(N*F)) ----
    acc = parts.reshape(ncs, gp, 2 * F).sum(axis=0)
    s1 = acc[:, :F]
    s2 = acc[:, F:]
    mean = shiftc + s1 * inv_n
    var = (s2 - s1 * s1 * inv_n) * inv_nm1                   # unbiased, matches torch .std()
    std = jnp.sqrt(jnp.maximum(var, 0.0))                    # NaN preserved for size-1 graphs
    scale = gamma2 / (std + eps)                             # fused affine coefficients
    shift_aff = beta2 - mean * scale

    # ---- pass 2: y = x * scale[g] + shift[g]  (one read + one lane-dense write of x) ----
    # scale/shift are tiny resident blocks; their double-buffer cost is negligible.
    # TODO(synk): for F < 128 a 128-lane repack of rows would make the stores fully
    # lane-dense, but it needs an extra gather pass over x, so it is skipped here.
    y_p = pl.pallas_call(
        _apply_kernel,
        out_shape=jax.ShapeDtypeStruct((n_pad, F), jnp.float32),
        grid_spec=pltpu.PrefetchScalarGridSpec(
            num_scalar_prefetch=0,
            grid=(n_pad // tr,),
            in_specs=[
                pl.BlockSpec((tr, 1), lambda r: (r, 0)),      # seg ids (int32)
                pl.BlockSpec((gp, F), lambda r: (0, 0)),      # scale (resident)
                pl.BlockSpec((gp, F), lambda r: (0, 0)),      # shift (resident)
                pl.BlockSpec((tr, F), lambda r: (r, 0)),      # x tile
            ],
            out_specs=pl.BlockSpec((tr, F), lambda r: (r, 0)),
        ),
        compiler_params=pltpu.CompilerParams(
            dimension_semantics=("parallel",),                # both v7x TensorCores
            vmem_limit_bytes=vmem_limit),
    )(seg_col, scale, shift_aff, x_p)

    return y_p if n_pad == N else y_p[:N]


def _reference(x, size, gamma, beta, eps=1e-5):
    outs = []
    off = 0
    for s in size:
        seg = x[off:off + s]
        mean = seg.mean(axis=0, keepdims=True)
        std = jnp.std(seg, axis=0, keepdims=True, ddof=1)
        outs.append((seg - mean) / (std + eps))
        off += s
    y = jnp.concatenate(outs, axis=0)
    return gamma * y + beta


if __name__ == "__main__":
    # --- test 1: the module's own small configuration (fused single-step path) ---
    feature_num = 32
    size = [3, 5]                     # two graphs, 3 + 5 = 8 nodes total
    N = sum(size)

    key = jax.random.PRNGKey(0)
    x = jax.random.normal(key, (N, feature_num), dtype=jnp.float32)
    gamma = jnp.ones((feature_num,), dtype=jnp.float32)   # nn.Parameter init: ones
    beta = jnp.zeros((feature_num,), dtype=jnp.float32)   # nn.Parameter init: zeros

    y = jax.block_until_ready(graph_norm(x, size, gamma, beta))
    y_ref = _reference(x, size, gamma, beta)
    assert y.shape == (N, feature_num)
    assert jnp.allclose(y, y_ref, atol=2e-5, rtol=2e-5), "fused path mismatch vs reference"

    # --- test 2: larger, offset data that exercises the streaming two-pass path ---
    feature_num_b = 128
    size_b = [300 + 17 * i for i in range(32)]             # 32 graphs, 18032 nodes
    N_b = sum(size_b)
    x_b = jax.random.normal(jax.random.PRNGKey(1), (N_b, feature_num_b),
                            dtype=jnp.float32) + 3.0       # nonzero mean: cancellation check
    gamma_b = 0.5 + jax.random.uniform(jax.random.PRNGKey(2), (feature_num_b,),
                                       dtype=jnp.float32)
    beta_b = jax.random.normal(jax.random.PRNGKey(3), (feature_num_b,),
                               dtype=jnp.float32)

    y_b = jax.block_until_ready(graph_norm(x_b, size_b, gamma_b, beta_b))
    y_b_ref = _reference(x_b, size_b, gamma_b, beta_b)
    assert y_b.shape == (N_b, feature_num_b)
    # one-pass (shifted) f32 statistics: slightly looser but still tight tolerance
    assert jnp.allclose(y_b, y_b_ref, atol=5e-5, rtol=5e-5), "streaming path mismatch vs reference"

    print("KERNEL_OK")
</pallas_src>

<mosaic_0001>
module attributes {stable_mosaic.version = 11 : i64} {
  func.func @kernel(%arg0: i32, %arg1: memref<1x8xi32, #tpu.memory_space<vmem>>, %arg2: memref<8x1xi32, #tpu.memory_space<vmem>>, %arg3: memref<8x1xf32, #tpu.memory_space<vmem>>, %arg4: memref<8x1xf32, #tpu.memory_space<vmem>>, %arg5: memref<1x32xf32, #tpu.memory_space<vmem>>, %arg6: memref<1x32xf32, #tpu.memory_space<vmem>>, %arg7: memref<8x32xf32, #tpu.memory_space<vmem>>, %arg8: memref<8x32xf32, #tpu.memory_space<vmem>>) attributes {dimension_semantics = [#tpu.dimension_semantics<arbitrary>], iteration_bounds = array<i64: 1>, scalar_prefetch = 0 : i64, scratch_operands = 0 : i64, tpu.core_type = #tpu.core_type<tc>, window_params = [{pipeline_mode = #tpu.pipeline_mode<synchronous>, transform_indices = @transform_0, window_bounds = array<i64: 1, 8>}, {pipeline_mode = #tpu.pipeline_mode<synchronous>, transform_indices = @transform_1, window_bounds = array<i64: 8, 1>}, {pipeline_mode = #tpu.pipeline_mode<synchronous>, transform_indices = @transform_2, window_bounds = array<i64: 8, 1>}, {pipeline_mode = #tpu.pipeline_mode<synchronous>, transform_indices = @transform_3, window_bounds = array<i64: 8, 1>}, {pipeline_mode = #tpu.pipeline_mode<synchronous>, transform_indices = @transform_4, window_bounds = array<i64: 1, 32>}, {pipeline_mode = #tpu.pipeline_mode<synchronous>, transform_indices = @transform_5, window_bounds = array<i64: 1, 32>}, {pipeline_mode = #tpu.pipeline_mode<synchronous>, transform_indices = @transform_6, window_bounds = array<i64: 8, 32>}, {pipeline_mode = #tpu.pipeline_mode<synchronous>, transform_indices = @transform_7, window_bounds = array<i64: 8, 32>}]} {
    %c0 = arith.constant 0 : index
    %c0_0 = arith.constant 0 : index
    %0 = vector.load %arg7[%c0, %c0_0] : memref<8x32xf32, #tpu.memory_space<vmem>>, vector<8x32xf32>
    %c0_1 = arith.constant 0 : index
    %c0_2 = arith.constant 0 : index
    %1 = vector.load %arg1[%c0_1, %c0_2] : memref<1x8xi32, #tpu.memory_space<vmem>>, vector<1x8xi32>
    %2 = tpu.iota {dimensions = array<i32: 0>} : vector<8x8xi32>
    %3 = vector.broadcast %1 : vector<1x8xi32> to vector<8x8xi32>
    %4 = arith.cmpi eq, %2, %3 : vector<8x8xi32>
    %cst = arith.constant 1.000000e+00 : f32
    %cst_3 = arith.constant 0.000000e+00 : f32
    %5 = vector.broadcast %cst : f32 to vector<8x8xf32>
    %6 = vector.broadcast %cst_3 : f32 to vector<8x8xf32>
    %7 = arith.select %4, %5, %6 : vector<8x8xi1>, vector<8x8xf32>
    %8 = arith.truncf %7 : vector<8x8xf32> to vector<8x8xbf16>
    %c0_4 = arith.constant 0 : index
    %c0_5 = arith.constant 0 : index
    %9 = vector.load %arg2[%c0_4, %c0_5] : memref<8x1xi32, #tpu.memory_space<vmem>>, vector<8x1xi32>
    %10 = tpu.iota {dimensions = array<i32: 1>} : vector<8x8xi32>
    %11 = vector.broadcast %9 : vector<8x1xi32> to vector<8x8xi32>
    %12 = arith.cmpi eq, %10, %11 : vector<8x8xi32>
    %cst_6 = arith.constant 1.000000e+00 : f32
    %cst_7 = arith.constant 0.000000e+00 : f32
    %13 = vector.broadcast %cst_6 : f32 to vector<8x8xf32>
    %14 = vector.broadcast %cst_7 : f32 to vector<8x8xf32>
    %15 = arith.select %12, %13, %14 : vector<8x8xi1>, vector<8x8xf32>
    %16 = arith.truncf %15 : vector<8x8xf32> to vector<8x8xbf16>
    %17 = arith.truncf %0 : vector<8x32xf32> to vector<8x32xbf16>
    %18 = arith.extf %17 : vector<8x32xbf16> to vector<8x32xf32>
    %19 = arith.subf %0, %18 : vector<8x32xf32>
    %20 = arith.truncf %19 : vector<8x32xf32> to vector<8x32xbf16>
    %21 = arith.extf %20 : vector<8x32xbf16> to vector<8x32xf32>
    %22 = arith.subf %19, %21 : vector<8x32xf32>
    %23 = arith.truncf %22 : vector<8x32xf32> to vector<8x32xbf16>
    %cst_8 = arith.constant dense<0.000000e+00> : vector<8x32xf32>
    %24 = tpu.matmul %8, %17, %cst_8 {dimension_numbers = #tpu.dot_dimension_numbers<[1], [0], [0], [1], [0, 0, 1, 1], [], []>} : vector<8x8xbf16>, vector<8x32xbf16>, vector<8x32xf32> -> vector<8x32xf32>
    %cst_9 = arith.constant dense<0.000000e+00> : vector<8x32xf32>
    %25 = tpu.matmul %8, %20, %cst_9 {dimension_numbers = #tpu.dot_dimension_numbers<[1], [0], [0], [1], [0, 0, 1, 1], [], []>} : vector<8x8xbf16>, vector<8x32xbf16>, vector<8x32xf32> -> vector<8x32xf32>
    %26 = arith.addf %24, %25 : vector<8x32xf32>
    %cst_10 = arith.constant dense<0.000000e+00> : vector<8x32xf32>
    %27 = tpu.matmul %8, %23, %cst_10 {dimension_numbers = #tpu.dot_dimension_numbers<[1], [0], [0], [1], [0, 0, 1, 1], [], []>} : vector<8x8xbf16>, vector<8x32xbf16>, vector<8x32xf32> -> vector<8x32xf32>
    %28 = arith.addf %26, %27 : vector<8x32xf32>
    %c0_11 = arith.constant 0 : index
    %c0_12 = arith.constant 0 : index
    %29 = vector.load %arg3[%c0_11, %c0_12] : memref<8x1xf32, #tpu.memory_space<vmem>>, vector<8x1xf32>
    %30 = vector.broadcast %29 : vector<8x1xf32> to vector<8x32xf32>
    %31 = arith.mulf %28, %30 : vector<8x32xf32>
    %32 = arith.truncf %31 : vector<8x32xf32> to vector<8x32xbf16>
    %33 = arith.extf %32 : vector<8x32xbf16> to vector<8x32xf32>
    %34 = arith.subf %31, %33 : vector<8x32xf32>
    %35 = arith.truncf %34 : vector<8x32xf32> to vector<8x32xbf16>
    %36 = arith.extf %35 : vector<8x32xbf16> to vector<8x32xf32>
    %37 = arith.subf %34, %36 : vector<8x32xf32>
    %38 = arith.truncf %37 : vector<8x32xf32> to vector<8x32xbf16>
    %cst_13 = arith.constant dense<0.000000e+00> : vector<8x32xf32>
    %39 = tpu.matmul %16, %32, %cst_13 {dimension_numbers = #tpu.dot_dimension_numbers<[1], [0], [0], [1], [0, 0, 1, 1], [], []>} : vector<8x8xbf16>, vector<8x32xbf16>, vector<8x32xf32> -> vector<8x32xf32>
    %cst_14 = arith.constant dense<0.000000e+00> : vector<8x32xf32>
    %40 = tpu.matmul %16, %35, %cst_14 {dimension_numbers = #tpu.dot_dimension_numbers<[1], [0], [0], [1], [0, 0, 1, 1], [], []>} : vector<8x8xbf16>, vector<8x32xbf16>, vector<8x32xf32> -> vector<8x32xf32>
    %41 = arith.addf %39, %40 : vector<8x32xf32>
    %cst_15 = arith.constant dense<0.000000e+00> : vector<8x32xf32>
    %42 = tpu.matmul %16, %38, %cst_15 {dimension_numbers = #tpu.dot_dimension_numbers<[1], [0], [0], [1], [0, 0, 1, 1], [], []>} : vector<8x8xbf16>, vector<8x32xbf16>, vector<8x32xf32> -> vector<8x32xf32>
    %43 = arith.addf %41, %42 : vector<8x32xf32>
    %44 = arith.subf %0, %43 : vector<8x32xf32>
    %45 = arith.mulf %44, %44 : vector<8x32xf32>
    %46 = arith.truncf %45 : vector<8x32xf32> to vector<8x32xbf16>
    %47 = arith.extf %46 : vector<8x32xbf16> to vector<8x32xf32>
    %48 = arith.subf %45, %47 : vector<8x32xf32>
    %49 = arith.truncf %48 : vector<8x32xf32> to vector<8x32xbf16>
    %50 = arith.extf %49 : vector<8x32xbf16> to vector<8x32xf32>
    %51 = arith.subf %48, %50 : vector<8x32xf32>
    %52 = arith.truncf %51 : vector<8x32xf32> to vector<8x32xbf16>
    %cst_16 = arith.constant dense<0.000000e+00> : vector<8x32xf32>
    %53 = tpu.matmul %8, %46, %cst_16 {dimension_numbers = #tpu.dot_dimension_numbers<[1], [0], [0], [1], [0, 0, 1, 1], [], []>} : vector<8x8xbf16>, vector<8x32xbf16>, vector<8x32xf32> -> vector<8x32xf32>
    %cst_17 = arith.constant dense<0.000000e+00> : vector<8x32xf32>
    %54 = tpu.matmul %8, %49, %cst_17 {dimension_numbers = #tpu.dot_dimension_numbers<[1], [0], [0], [1], [0, 0, 1, 1], [], []>} : vector<8x8xbf16>, vector<8x32xbf16>, vector<8x32xf32> -> vector<8x32xf32>
    %55 = arith.addf %53, %54 : vector<8x32xf32>
    %cst_18 = arith.constant dense<0.000000e+00> : vector<8x32xf32>
    %56 = tpu.matmul %8, %52, %cst_18 {dimension_numbers = #tpu.dot_dimension_numbers<[1], [0], [0], [1], [0, 0, 1, 1], [], []>} : vector<8x8xbf16>, vector<8x32xbf16>, vector<8x32xf32> -> vector<8x32xf32>
    %57 = arith.addf %55, %56 : vector<8x32xf32>
    %c0_19 = arith.constant 0 : index
    %c0_20 = arith.constant 0 : index
    %58 = vector.load %arg4[%c0_19, %c0_20] : memref<8x1xf32, #tpu.memory_space<vmem>>, vector<8x1xf32>
    %59 = vector.broadcast %58 : vector<8x1xf32> to vector<8x32xf32>
    %60 = arith.mulf %57, %59 : vector<8x32xf32>
    %c0_21 = arith.constant 0 : index
    %c0_22 = arith.constant 0 : index
    %61 = vector.load %arg5[%c0_21, %c0_22] : memref<1x32xf32, #tpu.memory_space<vmem>>, vector<1x32xf32>
    %62 = math.sqrt %60 : vector<8x32xf32>
    %cst_23 = arith.constant 9.99999974E-6 : f32
    %63 = vector.broadcast %cst_23 : f32 to vector<8x32xf32>
    %64 = arith.addf %62, %63 : vector<8x32xf32>
    %65 = vector.broadcast %61 : vector<1x32xf32> to vector<8x32xf32>
    %66 = arith.divf %65, %64 : vector<8x32xf32>
    %67 = arith.truncf %66 : vector<8x32xf32> to vector<8x32xbf16>
    %68 = arith.extf %67 : vector<8x32xbf16> to vector<8x32xf32>
    %69 = arith.subf %66, %68 : vector<8x32xf32>
    %70 = arith.truncf %69 : vector<8x32xf32> to vector<8x32xbf16>
    %71 = arith.extf %70 : vector<8x32xbf16> to vector<8x32xf32>
    %72 = arith.subf %69, %71 : vector<8x32xf32>
    %73 = arith.truncf %72 : vector<8x32xf32> to vector<8x32xbf16>
    %cst_24 = arith.constant dense<0.000000e+00> : vector<8x32xf32>
    %74 = tpu.matmul %16, %67, %cst_24 {dimension_numbers = #tpu.dot_dimension_numbers<[1], [0], [0], [1], [0, 0, 1, 1], [], []>} : vector<8x8xbf16>, vector<8x32xbf16>, vector<8x32xf32> -> vector<8x32xf32>
    %cst_25 = arith.constant dense<0.000000e+00> : vector<8x32xf32>
    %75 = tpu.matmul %16, %70, %cst_25 {dimension_numbers = #tpu.dot_dimension_numbers<[1], [0], [0], [1], [0, 0, 1, 1], [], []>} : vector<8x8xbf16>, vector<8x32xbf16>, vector<8x32xf32> -> vector<8x32xf32>
    %76 = arith.addf %74, %75 : vector<8x32xf32>
    %cst_26 = arith.constant dense<0.000000e+00> : vector<8x32xf32>
    %77 = tpu.matmul %16, %73, %cst_26 {dimension_numbers = #tpu.dot_dimension_numbers<[1], [0], [0], [1], [0, 0, 1, 1], [], []>} : vector<8x8xbf16>, vector<8x32xbf16>, vector<8x32xf32> -> vector<8x32xf32>
    %78 = arith.addf %76, %77 : vector<8x32xf32>
    %79 = arith.mulf %44, %78 : vector<8x32xf32>
    %c0_27 = arith.constant 0 : index
    %c0_28 = arith.constant 0 : index
    %80 = vector.load %arg6[%c0_27, %c0_28] : memref<1x32xf32, #tpu.memory_space<vmem>>, vector<1x32xf32>
    %81 = vector.broadcast %80 : vector<1x32xf32> to vector<8x32xf32>
    %82 = arith.addf %79, %81 : vector<8x32xf32>
    %c0_29 = arith.constant 0 : index
    %c0_30 = arith.constant 0 : index
    %83 = vector.load %arg8[%c0_29, %c0_30] : memref<8x32xf32, #tpu.memory_space<vmem>>, vector<8x32xf32>
    tpu.vector_store %arg8[%c0_29, %c0_30], %82 {strides = array<i32>} : memref<8x32xf32, #tpu.memory_space<vmem>>, vector<8x32xf32>,
    return
  }
  func.func @transform_0(%arg0: i32) -> (i32, i32) {
    %c0_i32 = arith.constant 0 : i32
    %c0_i32_0 = arith.constant 0 : i32
    %c0_i32_1 = arith.constant 0 : i32
    return %c0_i32, %c0_i32_0 : i32, i32
  }
  func.func @transform_1(%arg0: i32) -> (i32, i32) {
    %c0_i32 = arith.constant 0 : i32
    %c0_i32_0 = arith.constant 0 : i32
    %c0_i32_1 = arith.constant 0 : i32
    return %c0_i32, %c0_i32_0 : i32, i32
  }
  func.func @transform_2(%arg0: i32) -> (i32, i32) {
    %c0_i32 = arith.constant 0 : i32
    %c0_i32_0 = arith.constant 0 : i32
    %c0_i32_1 = arith.constant 0 : i32
    return %c0_i32, %c0_i32_0 : i32, i32
  }
  func.func @transform_3(%arg0: i32) -> (i32, i32) {
    %c0_i32 = arith.constant 0 : i32
    %c0_i32_0 = arith.constant 0 : i32
    %c0_i32_1 = arith.constant 0 : i32
    return %c0_i32, %c0_i32_0 : i32, i32
  }
  func.func @transform_4(%arg0: i32) -> (i32, i32) {
    %c0_i32 = arith.constant 0 : i32
    %c0_i32_0 = arith.constant 0 : i32
    %c0_i32_1 = arith.constant 0 : i32
    return %c0_i32, %c0_i32_0 : i32, i32
  }
  func.func @transform_5(%arg0: i32) -> (i32, i32) {
    %c0_i32 = arith.constant 0 : i32
    %c0_i32_0 = arith.constant 0 : i32
    %c0_i32_1 = arith.constant 0 : i32
    return %c0_i32, %c0_i32_0 : i32, i32
  }
  func.func @transform_6(%arg0: i32) -> (i32, i32) {
    %c0_i32 = arith.constant 0 : i32
    %c0_i32_0 = arith.constant 0 : i32
    %c0_i32_1 = arith.constant 0 : i32
    return %c0_i32, %c0_i32_0 : i32, i32
  }
  func.func @transform_7(%arg0: i32) -> (i32, i32) {
    %c0_i32 = arith.constant 0 : i32
    %c0_i32_0 = arith.constant 0 : i32
    %c0_i32_1 = arith.constant 0 : i32
    return %c0_i32, %c0_i32_0 : i32, i32
  }
}

</mosaic_0001>

<llo_original>
// kernel: tpu_custom_call.1
$region0: #{tpu_custom_call.1}
  #allocation0 [shape = 'u32[]', space=smem, size = 0x4, offset = 0x4, fixed_abs, tag = 'smem constant byte address 0x4 - core index']
  #allocation1 [shape = 'u32[72,128]{1,0:T(1,128)}', space=vmem, size = 0x9000, scoped, tag = 'internal scratch']
  %s0 = inlined_call_operand.vmem [shape: s32[1,8], index: 0, kind: input, shape index: {}]
  %s1 = inlined_call_operand.vmem [shape: s32[8,1], index: 1, kind: input, shape index: {}]
  %s2 = inlined_call_operand.vmem [shape: f32[8,1], index: 2, kind: input, shape index: {}]
  %s3 = inlined_call_operand.vmem [shape: f32[8,1], index: 3, kind: input, shape index: {}]
  %s4 = inlined_call_operand.vmem [shape: f32[1,32], index: 4, kind: input, shape index: {}]
  %s5 = inlined_call_operand.vmem [shape: f32[1,32], index: 5, kind: input, shape index: {}]
  %s6 = inlined_call_operand.vmem [shape: f32[8,32], index: 6, kind: input, shape index: {}]
  %s7 = inlined_call_operand.hbm [shape: f32[8,32], index: 7, kind: output, shape index: {}]
  %s8 = sld [smem:[#allocation0]]
  $region38: #{tpu_custom_call.1} parent=0
    _
  %s10 = ssub.s32 1, %s8
  %s11 = scalar_select 0, %s10, %s8
  $region1: #{tpu_custom_call.1} parent=0
    #allocation2 [shape = 'u8[4096]{0}', space=vmem, size = 0x1000, scoped, tag = 'output window, operand 0, single buffered']
    #allocation3 [shape = 's32[1]{0}', space=sflag, size = 0x4, scoped, tag = 'scoped memory for tpu_custom_call.1']
    %12 = vsyncpa [#allocation3], 0
    // Predicated region
    $region2: #{tpu_custom_call.1} parent=1 // pred_check
      _
    $region3: #{tpu_custom_call.1} parent=1 // pred_check_branch
      %14 = sbr.rel (0) target = $region5
    $region4: #{tpu_custom_call.1} parent=1 // pred_region
      _
    $region5: #{tpu_custom_call.1} parent=1 // pred_fallthru
      _
    // Predicated region
    $region6: #{tpu_custom_call.1} parent=1 // pred_check
      _
    $region7: #{tpu_custom_call.1} parent=1 // pred_check_branch
      %16 = sbr.rel (0) target = $region9
    $region8: #{tpu_custom_call.1} parent=1 // pred_region
      _
    $region9: #{tpu_custom_call.1} parent=1 // pred_fallthru
      _
    // Predicated region
    $region10: #{tpu_custom_call.1} parent=1 // pred_check
      _
    $region11: #{tpu_custom_call.1} parent=1 // pred_check_branch
      %18 = sbr.rel (0) target = $region13
    $region12: #{tpu_custom_call.1} parent=1 // pred_region
      _
    $region13: #{tpu_custom_call.1} parent=1 // pred_fallthru
      _
    // Predicated region
    $region14: #{tpu_custom_call.1} parent=1 // pred_check
      _
    $region15: #{tpu_custom_call.1} parent=1 // pred_check_branch
      %20 = sbr.rel (0) target = $region17
    $region16: #{tpu_custom_call.1} parent=1 // pred_region
      _
    $region17: #{tpu_custom_call.1} parent=1 // pred_fallthru
      _
    // Predicated region
    $region18: #{tpu_custom_call.1} parent=1 // pred_check
      _
    $region19: #{tpu_custom_call.1} parent=1 // pred_check_branch
      %22 = sbr.rel (0) target = $region21
    $region20: #{tpu_custom_call.1} parent=1 // pred_region
      _
    $region21: #{tpu_custom_call.1} parent=1 // pred_fallthru
      _
    // Predicated region
    $region22: #{tpu_custom_call.1} parent=1 // pred_check
      _
    $region23: #{tpu_custom_call.1} parent=1 // pred_check_branch
      %24 = sbr.rel (0) target = $region25
    $region24: #{tpu_custom_call.1} parent=1 // pred_region
      _
    $region25: #{tpu_custom_call.1} parent=1 // pred_fallthru
      _
    // Predicated region
    $region26: #{tpu_custom_call.1} parent=1 // pred_check
      _
    $region27: #{tpu_custom_call.1} parent=1 // pred_check_branch
      %26 = sbr.rel (0) target = $region29
    $region28: #{tpu_custom_call.1} parent=1 // pred_region
      _
    $region29: #{tpu_custom_call.1} parent=1 // pred_fallthru
      _
    %v28 = vld [vmem:[%s6] sm:$0xff]
    %v29 = vld [vmem:[%s0] sm:$0x1]
    %v30 = vlaneseq
    %v31 = vshrl.u32 %v30, 7
    %v32 = vperm.slane %v29, 0
    %vm33 = vcmp.eq.s32.totalorder %v31, %v32
    %v34 = vsel %vm33, 1.0, 0.0
    %v35 = vpack.c.bf16 %v34, %v34
    %v36 = vld [vmem:[%s1] sm:$0xff]
    %v37 = vlaneseq
    %v38 = vand.u32 %v37, 127
    %39 = vset.pattern.permute.xlu0 0
    %40 = vperm.xlu0 %39, %v36
    %v41 = vpop.permute.xlu0 %40
    %vm42 = vcmp.eq.s32.totalorder %v38, %v41
    %v43 = vsel %vm42, 1.0, 0.0
    %v44 = vpack.c.bf16 %v43, %v43
    %v45 = vpack.c.bf16 %v28, %v28
    %v46 = vunpack.c.l.bf16 %v45
    %v47 = vsub.f32 %v28, %v46
    %v48 = vpack.c.bf16 %v47, %v47
    %v49 = vunpack.c.l.bf16 %v48
    %v50 = vsub.f32 %v47, %v49
    %v51 = vpack.c.bf16 %v50, %v50
    %vm52 = vcmask 64512
    %v54 = vsel %vm52, %v35, 0
    %vm56 = vcmask 1043456
    %v58 = vsel %vm56, %v48, 0
    %60 = vmatpush.bf16.msra.mxu0 0
    %61 = vmatpush.bf16.msra.mxu0 0
    %62 = vmatpush.bf16.msra.mxu0 0
    %63 = vmatpush.bf16.msra.mxu0 0
    %64 = vmatpush.bf16.msra.mxu0 0
    %65 = vmatpush.bf16.msra.mxu0 0
    %66 = vmatpush.bf16.msra.mxu0 0
    %67 = vmatpush.bf16.msra.mxu0 %v58
    %68 = vmatmul.bf16.gmra.mxu0 %v54
    %v69 = vpop.f32.mrf.mxu0
    %v70 = vadd.f32 0.0, %v69
    %v71 = vpop.f32.mrf.mxu0
    %72 = vdwg.mxu0
    %v74 = vsel %vm56, %v45, 0
    %76 = vmatpush.bf16.msra.mxu0 0
    %77 = vmatpush.bf16.msra.mxu0 0
    %78 = vmatpush.bf16.msra.mxu0 0
    %79 = vmatpush.bf16.msra.mxu0 0
    %80 = vmatpush.bf16.msra.mxu0 0
    %81 = vmatpush.bf16.msra.mxu0 0
    %82 = vmatpush.bf16.msra.mxu0 0
    %83 = vmatpush.bf16.msra.mxu0 %v74
    %84 = vmatmul.bf16.gmra.mxu0 %v54
    %v85 = vpop.f32.mrf.mxu0
    %v86 = vadd.f32 %v70, %v85
    %v87 = vpop.f32.mrf.mxu0
    %88 = vdwg.mxu0
    %v90 = vsel %vm56, %v51, 0
    %92 = vmatpush.bf16.msra.mxu0 0
    %93 = vmatpush.bf16.msra.mxu0 0
    %94 = vmatpush.bf16.msra.mxu0 0
    %95 = vmatpush.bf16.msra.mxu0 0
    %96 = vmatpush.bf16.msra.mxu0 0
    %97 = vmatpush.bf16.msra.mxu0 0
    %98 = vmatpush.bf16.msra.mxu0 0
    %99 = vmatpush.bf16.msra.mxu0 %v90
    %100 = vmatmul.bf16.gmra.mxu0 %v54
    %v101 = vpop.f32.mrf.mxu0
    %v102 = vadd.f32 0.0, %v101
    %v103 = vpop.f32.mrf.mxu0
    %104 = vdwg.mxu0
    %v105 = vadd.f32 %v86, %v102
    %v106 = vld [vmem:[%s2] sm:$0xff]
    %108 = vset.pattern.permute.xlu0 0
    %109 = vperm.xlu0 %108, %v106
    %v110 = vpop.permute.xlu0 %109
    %v112 = vmul.f32 %v105, %v110
    %v113 = vpack.c.bf16 %v112, %v112
    %v114 = vunpack.c.l.bf16 %v113
    %v115 = vsub.f32 %v112, %v114
    %v116 = vpack.c.bf16 %v115, %v115
    %v117 = vunpack.c.l.bf16 %v116
    %v118 = vsub.f32 %v115, %v117
    %v119 = vpack.c.bf16 %v118, %v118
    %v121 = vsel %vm52, %v44, 0
    %v124 = vsel %vm56, %v116, 0
    %126 = vmatpush.bf16.msra.mxu0 0
    %127 = vmatpush.bf16.msra.mxu0 0
    %128 = vmatpush.bf16.msra.mxu0 0
    %129 = vmatpush.bf16.msra.mxu0 0
    %130 = vmatpush.bf16.msra.mxu0 0
    %131 = vmatpush.bf16.msra.mxu0 0
    %132 = vmatpush.bf16.msra.mxu0 0
    %133 = vmatpush.bf16.msra.mxu0 %v124
    %134 = vmatmul.bf16.gmra.mxu0 %v121
    %v135 = vpop.f32.mrf.mxu0
    %v136 = vadd.f32 0.0, %v135
    %v137 = vpop.f32.mrf.mxu0
    %138 = vdwg.mxu0
    %v140 = vsel %vm56, %v113, 0
    %142 = vmatpush.bf16.msra.mxu0 0
    %143 = vmatpush.bf16.msra.mxu0 0
    %144 = vmatpush.bf16.msra.mxu0 0
    %145 = vmatpush.bf16.msra.mxu0 0
    %146 = vmatpush.bf16.msra.mxu0 0
    %147 = vmatpush.bf16.msra.mxu0 0
    %148 = vmatpush.bf16.msra.mxu0 0
    %149 = vmatpush.bf16.msra.mxu0 %v140
    %150 = vmatmul.bf16.gmra.mxu0 %v121
    %v151 = vpop.f32.mrf.mxu0
    %v152 = vadd.f32 %v136, %v151
    %v153 = vpop.f32.mrf.mxu0
    %154 = vdwg.mxu0
    %v156 = vsel %vm56, %v119, 0
    %158 = vmatpush.bf16.msra.mxu0 0
    %159 = vmatpush.bf16.msra.mxu0 0
    %160 = vmatpush.bf16.msra.mxu0 0
    %161 = vmatpush.bf16.msra.mxu0 0
    %162 = vmatpush.bf16.msra.mxu0 0
    %163 = vmatpush.bf16.msra.mxu0 0
    %164 = vmatpush.bf16.msra.mxu0 0
    %165 = vmatpush.bf16.msra.mxu0 %v156
    %166 = vmatmul.bf16.gmra.mxu0 %v121
    %v167 = vpop.f32.mrf.mxu0
    %v168 = vadd.f32 0.0, %v167
    %v169 = vpop.f32.mrf.mxu0
    %170 = vdwg.mxu0
    %v171 = vadd.f32 %v152, %v168
    %v172 = vsub.f32 %v28, %v171
    %v173 = vmul.f32 %v172, %v172
    %v174 = vpack.c.bf16 %v173, %v173
    %v175 = vunpack.c.l.bf16 %v174
    %v176 = vsub.f32 %v173, %v175
    %v177 = vpack.c.bf16 %v176, %v176
    %v178 = vunpack.c.l.bf16 %v177
    %v179 = vsub.f32 %v176, %v178
    %v180 = vpack.c.bf16 %v179, %v179
    %v182 = vsel %vm56, %v177, 0
    %184 = vmatpush.bf16.msra.mxu0 0
    %185 = vmatpush.bf16.msra.mxu0 0
    %186 = vmatpush.bf16.msra.mxu0 0
    %187 = vmatpush.bf16.msra.mxu0 0
    %188 = vmatpush.bf16.msra.mxu0 0
    %189 = vmatpush.bf16.msra.mxu0 0
    %190 = vmatpush.bf16.msra.mxu0 0
    %191 = vmatpush.bf16.msra.mxu0 %v182
    %192 = vmatmul.bf16.gmra.mxu0 %v54
    %v193 = vpop.f32.mrf.mxu0
    %v194 = vadd.f32 0.0, %v193
    %v195 = vpop.f32.mrf.mxu0
    %196 = vdwg.mxu0
    %v198 = vsel %vm56, %v174, 0
    %200 = vmatpush.bf16.msra.mxu0 0
    %201 = vmatpush.bf16.msra.mxu0 0
    %202 = vmatpush.bf16.msra.mxu0 0
    %203 = vmatpush.bf16.msra.mxu0 0
    %204 = vmatpush.bf16.msra.mxu0 0
    %205 = vmatpush.bf16.msra.mxu0 0
    %206 = vmatpush.bf16.msra.mxu0 0
    %207 = vmatpush.bf16.msra.mxu0 %v198
    %208 = vmatmul.bf16.gmra.mxu0 %v54
    %v209 = vpop.f32.mrf.mxu0
    %v210 = vadd.f32 %v194, %v209
    %v211 = vpop.f32.mrf.mxu0
    %212 = vdwg.mxu0
    %v214 = vsel %vm56, %v180, 0
    %216 = vmatpush.bf16.msra.mxu0 0
    %217 = vmatpush.bf16.msra.mxu0 0
    %218 = vmatpush.bf16.msra.mxu0 0
    %219 = vmatpush.bf16.msra.mxu0 0
    %220 = vmatpush.bf16.msra.mxu0 0
    %221 = vmatpush.bf16.msra.mxu0 0
    %222 = vmatpush.bf16.msra.mxu0 0
    %223 = vmatpush.bf16.msra.mxu0 %v214
    %224 = vmatmul.bf16.gmra.mxu0 %v54
    %v225 = vpop.f32.mrf.mxu0
    %v226 = vadd.f32 0.0, %v225
    %v227 = vpop.f32.mrf.mxu0
    %228 = vdwg.mxu0
    %v229 = vadd.f32 %v210, %v226
    %v230 = vld [vmem:[%s3] sm:$0xff]
    %232 = vset.pattern.permute.xlu0 0
    %233 = vperm.xlu0 %232, %v230
    %v234 = vpop.permute.xlu0 %233
    %v236 = vmul.f32 %v229, %v234
    %v237 = vld [vmem:[%s4] sm:$0x1]
    %v238 = vrsqrt.pop %v236
    %v239 = vmul.f32 %v238, %v236
    %v240 = vmul.f32 %v239, %v238
    %v241 = vmul.f32 0.5, %v240
    %v242 = vsub.f32 1.5, %v241
    %v243 = vmul.f32 %v238, %v242
    %v244 = vmul.f32 %v236, %v243
    %vm245 = vcmp.eq.f32.partialorder %v236, inf
    %v246 = vsel %vm245, %v236, %v244
    %vm247 = vcmp.eq.f32.partialorder %v236, 0.0
    %v248 = vand.u32 %v236, 2147483648
    %v249 = vsel %vm247, %v248, %v246
    %v250 = vadd.f32 %v249, 1e-05
    %v252 = vperm.slane %v237, 0
    %v254 = vrcp.pop %v250
    %v255 = vmul.f32 %v250, %v254
    %v256 = vsub.f32 1.0, %v255
    %v257 = vmul.f32 %v254, %v256
    %v258 = vadd.f32 %v254, %v257
    %vm259 = vweird.f32 %v250
    %vm260 = vweird.f32 %v254
    %vm261 = vmor %vm259, %vm260
    %v262 = vsel %vm261, %v254, %v258
    %v263 = vand.u32 2147483647, %v250
    %vm264 = vcmp.eq.f32.partialorder %v263, 8.507059e+37
    %v265 = vand.u32 %v250, 2147483648
    %v266 = vor.u32 1.1754944e-38, %v265
    %v267 = vsel %vm264, %v266, %v262
    %v268 = vmul.f32 %v252, %v267
    %v269 = vpack.c.bf16 %v268, %v268
    %v270 = vunpack.c.l.bf16 %v269
    %v271 = vsub.f32 %v268, %v270
    %v272 = vpack.c.bf16 %v271, %v271
    %v273 = vunpack.c.l.bf16 %v272
    %v274 = vsub.f32 %v271, %v273
    %v275 = vpack.c.bf16 %v274, %v274
    %v277 = vsel %vm56, %v272, 0
    %279 = vmatpush.bf16.msra.mxu0 0
    %280 = vmatpush.bf16.msra.mxu0 0
    %281 = vmatpush.bf16.msra.mxu0 0
    %282 = vmatpush.bf16.msra.mxu0 0
    %283 = vmatpush.bf16.msra.mxu0 0
    %284 = vmatpush.bf16.msra.mxu0 0
    %285 = vmatpush.bf16.msra.mxu0 0
    %286 = vmatpush.bf16.msra.mxu0 %v277
    %287 = vmatmul.bf16.gmra.mxu0 %v121
    %v288 = vpop.f32.mrf.mxu0
    %v289 = vadd.f32 0.0, %v288
    %v290 = vpop.f32.mrf.mxu0
    %291 = vdwg.mxu0
    %v293 = vsel %vm56, %v269, 0
    %295 = vmatpush.bf16.msra.mxu0 0
    %296 = vmatpush.bf16.msra.mxu0 0
    %297 = vmatpush.bf16.msra.mxu0 0
    %298 = vmatpush.bf16.msra.mxu0 0
    %299 = vmatpush.bf16.msra.mxu0 0
    %300 = vmatpush.bf16.msra.mxu0 0
    %301 = vmatpush.bf16.msra.mxu0 0
    %302 = vmatpush.bf16.msra.mxu0 %v293
    %303 = vmatmul.bf16.gmra.mxu0 %v121
    %v304 = vpop.f32.mrf.mxu0
    %v305 = vadd.f32 %v289, %v304
    %v306 = vpop.f32.mrf.mxu0
    %307 = vdwg.mxu0
    %v309 = vsel %vm56, %v275, 0
    %311 = vmatpush.bf16.msra.mxu0 0
    %312 = vmatpush.bf16.msra.mxu0 0
    %313 = vmatpush.bf16.msra.mxu0 0
    %314 = vmatpush.bf16.msra.mxu0 0
    %315 = vmatpush.bf16.msra.mxu0 0
    %316 = vmatpush.bf16.msra.mxu0 0
    %317 = vmatpush.bf16.msra.mxu0 0
    %318 = vmatpush.bf16.msra.mxu0 %v309
    %319 = vmatmul.bf16.gmra.mxu0 %v121
    %v320 = vpop.f32.mrf.mxu0
    %v321 = vadd.f32 0.0, %v320
    %v322 = vpop.f32.mrf.mxu0
    %323 = vdwg.mxu0
    %v324 = vadd.f32 %v305, %v321
    %v325 = vmul.f32 %v172, %v324
    %v326 = vld [vmem:[%s5] sm:$0x1]
    %v328 = vperm.slane %v326, 0
    %v330 = vadd.f32 %v325, %v328
    %vm331 = vcmask 261120
    %332 = vst.msk [vmem:[#allocation2] sm:$0xff] %vm331, %v330
    // Predicated region
    $region30: #{tpu_custom_call.1} parent=1 // pred_check
      _
    $region31: #{tpu_custom_call.1} parent=1 // pred_check_branch
      %334 = sbr.rel (0) target = $region33
    $region32: #{tpu_custom_call.1} parent=1 // pred_region
      %336 = vsyncadd [#allocation3], 0
      %s338 = sshll.u32 [#allocation2], 4
      %s339 = int_to_ptr.vmem [resolvable:$true] %s338
      %s340 = sshll.u32 %s7, 4
      %s341 = int_to_ptr.hbm [resolvable:$true] %s340
      %343 = dma.vmem_to_hbm [thread:$0]  %s339, 128, %s341, [#allocation3]
    $region33: #{tpu_custom_call.1} parent=1 // pred_fallthru
      _
    // Predicated region
    $region34: #{tpu_custom_call.1} parent=1 // pred_check
      _
    $region35: #{tpu_custom_call.1} parent=1 // pred_check_branch
      %345 = sbr.rel (0) target = $region37
    $region36: #{tpu_custom_call.1} parent=1 // pred_region
      %347 = dma.done [#allocation3], 128
    $region37: #{tpu_custom_call.1} parent=1 // pred_fallthru
      _
    %348 = vsyncpa [#allocation3], 1

</llo_original>
